<compile_context>
chip_gen: v7x
topology: tpu7x:2x2x1
jax: 0.10.0
libtpu: 0.0.40
codegen_flags: <defaults>
</compile_context>

<pallas_src>
import jax
import jax.numpy as jnp
from jax import lax
from jax.experimental import pallas as pl
from jax.experimental.pallas import tpu as pltpu

TP_MARGIN = 0.05        # losses.TripletMarginLoss() default margin
MINER_MARGIN = 0.2      # miners.TripletMarginMiner(margin=0.2)
CE_LABEL_SMOOTH = 0.1
CE_SCALE = 16.0
TP_WEIGHT = 1.0
CE_WEIGHT = 0.1


def _loss_agg_kernel(lab_col_ref, lab_row_ref, lab_rep_ref, tp_ref, ce_ref, out_ref):
    # lab_col_ref : (B, 1)    int32  VMEM  labels (column / anchor axis)
    # lab_row_ref : (1, B)    int32  VMEM  labels (row)
    # lab_rep_ref : (1, B*d)  int32  VMEM  labels[j // d] (CE per-position targets)
    # tp_ref      : (B, D)    any    VMEM  flattened TP_feat
    # ce_ref      : (C, B*d)  any    VMEM  lane-dense CE logits
    # out_ref     : (4,)      f32    SMEM  [loss_sum, TP_loss, CE_loss, num_mined]
    f32 = jnp.float32
    B = tp_ref.shape[0]
    C, Bd = ce_ref.shape
    BB = B * B

    def mm(a, b):
        return lax.dot_general(a, b, (((1,), (0,)), ((), ())),
                               preferred_element_type=f32)

    # -------- triplet distances: rsqrt-normalize + gram (MXU) --------
    x = tp_ref[...].astype(f32)
    sumsq = jnp.sum(x * x, axis=-1, keepdims=True)
    xn = x * lax.rsqrt(jnp.maximum(sumsq, 1e-24))        # == x / max(||x||, 1e-12)
    gram = lax.dot_general(xn, xn, (((1,), (1,)), ((), ())),
                           preferred_element_type=f32)   # (B, B)
    dist = jnp.sqrt(jnp.maximum(2.0 - 2.0 * gram, 0.0))  # (B, B) euclidean, symmetric

    # -------- flat triplet layout: sublane = anchor a, lane j = p*B + n --------
    lane = lax.broadcasted_iota(jnp.int32, (B, BB), 1)
    sub = lax.broadcasted_iota(jnp.int32, (B, BB), 0)
    off = lane - sub * B
    in_block = jnp.logical_and(off >= 0, off < B)        # sublane == j // B  (i.e. a == p)
    sel_p = jnp.where(in_block, 1.0, 0.0)                # (B, BB) one-hot of p = j // B
    jmod = jnp.sum(jnp.where(in_block, off.astype(f32), 0.0),
                   axis=0, keepdims=True)                # (1, BB) = j % B (= n), exact
    idx_col = lax.broadcasted_iota(jnp.int32, (B, 1), 0).astype(f32)
    sel_n = jnp.where(idx_col == jmod, 1.0, 0.0)         # (B, BB) one-hot of n = j % B

    d_ap = mm(dist, sel_p)                               # (B, BB): dist[a, p]
    d_an = mm(dist, sel_n)                               # (B, BB): dist[a, n]

    lab_col = lab_col_ref[...]                           # (B, 1) int32
    lab_row = lab_row_ref[...]                           # (1, B) int32
    same = lab_col == lab_row                            # (B, B): labels[a] == labels[q]
    aa = lax.broadcasted_iota(jnp.int32, (B, B), 0)
    qq = lax.broadcasted_iota(jnp.int32, (B, B), 1)
    pos_small = jnp.where(jnp.logical_and(same, aa != qq), 1.0, 0.0)  # positive pairs
    neg_small = jnp.where(same, 0.0, 1.0)                             # negative pairs
    pos_ap = mm(pos_small, sel_p)                        # (B, BB): (a, p) positive pair
    neg_an = mm(neg_small, sel_n)                        # (B, BB): labels[a] != labels[n]
    valid = jnp.logical_and(pos_ap > 0.5, neg_an > 0.5)  # exact 0/1 values -> robust

    viol = d_ap - d_an
    hinge = viol + TP_MARGIN
    active = jnp.logical_and(valid, hinge > 0.0)
    loss_tot = jnp.sum(jnp.where(active, hinge, 0.0))
    nonzero = jnp.sum(jnp.where(active, 1.0, 0.0))
    mined = jnp.sum(jnp.where(jnp.logical_and(valid, viol >= -MINER_MARGIN), 1.0, 0.0))
    # AvgNonZeroReducer: mean over strictly positive losses, 0 if there are none.
    tp_loss = jnp.where(nonzero > 0.0, loss_tot / jnp.maximum(nonzero, 1.0), 0.0)

    # -------- label-smoothed cross entropy on lane-dense (C, B*d) logits --------
    z = ce_ref[...].astype(f32) * CE_SCALE               # (C, Bd)
    m = jnp.max(z, axis=0, keepdims=True)                # (1, Bd)
    lse = jnp.log(jnp.sum(jnp.exp(z - m), axis=0, keepdims=True))
    z_sum = jnp.sum(z, axis=0, keepdims=True)            # (1, Bd): sum_c z
    c_iota = lax.broadcasted_iota(jnp.int32, (C, Bd), 0)
    z_tgt = jnp.sum(jnp.where(c_iota == lab_rep_ref[...], z, 0.0),
                    axis=0, keepdims=True)               # (1, Bd): z[target_j, j]
    # per-position loss = -[(1-eps) z_t + (eps/C) sum_c z - (m + lse)]
    per_pos = ((1.0 - CE_LABEL_SMOOTH) * z_tgt
               + (CE_LABEL_SMOOTH / float(C)) * z_sum
               - (m + lse))
    ce_loss = -jnp.sum(per_pos) / float(Bd)

    # -------- aggregate --------
    out_ref[0] = TP_WEIGHT * tp_loss + CE_WEIGHT * ce_loss
    out_ref[1] = tp_loss
    out_ref[2] = ce_loss
    out_ref[3] = mined        # exact in f32 for counts < 2^24; cast to int in wrapper


def _fused_loss_call(lab_col, lab_row, lab_rep, tp_flat, ce_lane):
    B, D = tp_flat.shape
    C, Bd = ce_lane.shape
    n_in = 5
    cost = pl.CostEstimate(
        flops=2 * B * B * D + 8 * B ** 4 + 40 * B * B + 12 * C * Bd,
        transcendentals=C * Bd + Bd + 2 * B + B * B,
        bytes_accessed=(tp_flat.size * tp_flat.dtype.itemsize
                        + ce_lane.size * ce_lane.dtype.itemsize
                        + 4 * (lab_col.size + lab_row.size + lab_rep.size + 4)),
    )
    return pl.pallas_call(
        _loss_agg_kernel,
        out_shape=jax.ShapeDtypeStruct((4,), jnp.float32),
        in_specs=[pl.BlockSpec(memory_space=pltpu.VMEM)] * n_in,
        out_specs=pl.BlockSpec(memory_space=pltpu.SMEM),
        compiler_params=pltpu.CompilerParams(allow_input_fusion=[True] * n_in),
        cost_estimate=cost,
    )(lab_col, lab_row, lab_rep, tp_flat, ce_lane)


def loss_aggregator_forward(tp_feat, ce_feat, labels):
    B = tp_feat.shape[0]
    C = ce_feat.shape[1]
    d = ce_feat.shape[-1]
    tp_flat = tp_feat.reshape(B, -1)                               # view(B, -1)
    ce_lane = jnp.transpose(ce_feat, (1, 0, 2)).reshape(C, B * d)  # lane-dense logits
    labels_i32 = labels.astype(jnp.int32).reshape(B)
    lab_col = labels_i32.reshape(B, 1)
    lab_row = labels_i32.reshape(1, B)
    lab_rep = jnp.repeat(labels_i32, d).reshape(1, B * d)          # labels[j // d]
    out = _fused_loss_call(lab_col, lab_row, lab_rep, tp_flat, ce_lane)
    loss_sum, tp_loss, ce_l, mined_f = out[0], out[1], out[2], out[3]
    # TODO(synk): the miner's indices_tuple (variable-length triplet index lists) is
    # not materialized; only num_triplets is reproduced (the torch module ignores the
    # index lists in its loss computation anyway).
    return [loss_sum, tp_loss, ce_l], mined_f.astype(jnp.int32)


def _reference(tp_feat, ce_feat, labels):
    """Pure-JAX (plain XLA) reference with identical semantics."""
    B = tp_feat.shape[0]
    x = tp_feat.reshape(B, -1).astype(jnp.float32)
    xn = x / jnp.maximum(jnp.linalg.norm(x, axis=-1, keepdims=True), 1e-12)
    diff = xn[:, None, :] - xn[None, :, :]
    dist = jnp.sqrt(jnp.sum(diff * diff, axis=-1))                 # (B, B)
    lab = labels.reshape(B)
    same = lab[:, None] == lab[None, :]
    pos = jnp.logical_and(same, ~jnp.eye(B, dtype=bool))           # (a, p)
    neg = ~same                                                    # (a, n)
    valid = jnp.logical_and(pos[:, :, None], neg[:, None, :])      # (a, p, n)
    viol = dist[:, :, None] - dist[:, None, :]                     # d_ap - d_an
    hinge = viol + TP_MARGIN
    act = jnp.logical_and(valid, hinge > 0)
    tot = jnp.sum(jnp.where(act, hinge, 0.0))
    nz = jnp.sum(act)
    tp_loss = jnp.where(nz > 0, tot / jnp.maximum(nz, 1), 0.0)
    mined = jnp.sum(jnp.logical_and(valid, viol >= -MINER_MARGIN))
    z = ce_feat.astype(jnp.float32) * CE_SCALE                     # (B, C, d)
    logp = jax.nn.log_softmax(z, axis=1)
    C = z.shape[1]
    onehot = jax.nn.one_hot(lab, C, axis=-1)                       # (B, C)
    lp_t = jnp.sum(logp * onehot[:, :, None], axis=1)              # (B, d)
    ce = -jnp.mean((1.0 - CE_LABEL_SMOOTH) * lp_t
                   + (CE_LABEL_SMOOTH / C) * jnp.sum(logp, axis=1))
    return tp_loss, ce, mined


if __name__ == "__main__":
    key = jax.random.PRNGKey(0)
    k1, k2, k3 = jax.random.split(key, 3)

    B = 8
    C_TP, W_TP = 4, 8            # TP_feat (B, 4, 8) -> flattened (B, 32)
    NUM_CLASSES, D_CE = 16, 16   # CE_feat (B, 16, 16); B * D_CE = 128 (lane-dense)

    tp_feat = jax.random.normal(k1, (B, C_TP, W_TP), dtype=jnp.float32)
    ce_feat = jax.random.normal(k2, (B, NUM_CLASSES, D_CE), dtype=jnp.float32)
    labels = jax.random.randint(k3, (B,), 0, 4, dtype=jnp.int32)

    (loss_sum, tp_loss, ce_l), mined = jax.jit(loss_aggregator_forward)(
        tp_feat, ce_feat, labels)
    jax.block_until_ready((loss_sum, tp_loss, ce_l, mined))

    # Correctness check against a plain-XLA reference (generous fp tolerances).
    ref_tp, ref_ce, ref_mined = _reference(tp_feat, ce_feat, labels)
    ref_sum = TP_WEIGHT * ref_tp + CE_WEIGHT * ref_ce

    def _close(a, b, tol=1e-2):
        return abs(float(a) - float(b)) <= tol + 1e-3 * abs(float(b))

    assert _close(tp_loss, ref_tp), (float(tp_loss), float(ref_tp))
    assert _close(ce_l, ref_ce), (float(ce_l), float(ref_ce))
    assert _close(loss_sum, ref_sum), (float(loss_sum), float(ref_sum))
    assert abs(int(mined) - int(ref_mined)) <= 1, (int(mined), int(ref_mined))

    print("KERNEL_OK")
</pallas_src>

<mosaic_0001>
module attributes {stable_mosaic.version = 11 : i64} {
  func.func @_loss_agg_kernel(%arg0: memref<8x1xi32, #tpu.memory_space<vmem>>, %arg1: memref<1x8xi32, #tpu.memory_space<vmem>>, %arg2: memref<1x128xi32, #tpu.memory_space<vmem>>, %arg3: memref<8x32xf32, #tpu.memory_space<vmem>>, %arg4: memref<16x128xf32, #tpu.memory_space<vmem>>, %arg5: memref<4xf32, #tpu.memory_space<smem>>) attributes {dimension_semantics = [], scalar_prefetch = 0 : i64, scratch_operands = 0 : i64, tpu.core_type = #tpu.core_type<tc>} {
    %c0 = arith.constant 0 : index
    %c0_0 = arith.constant 0 : index
    %0 = vector.load %arg3[%c0, %c0_0] : memref<8x32xf32, #tpu.memory_space<vmem>>, vector<8x32xf32>
    %1 = arith.mulf %0, %0 : vector<8x32xf32>
    %cst = arith.constant dense<0.000000e+00> : vector<8xf32>
    %2 = vector.multi_reduction <add>, %1, %cst [1] : vector<8x32xf32> to vector<8xf32>
    %3 = vector.shape_cast %2 : vector<8xf32> to vector<8x1xf32>
    %cst_1 = arith.constant 1.000000e-24 : f32
    %4 = vector.broadcast %cst_1 : f32 to vector<8x1xf32>
    %5 = arith.maximumf %3, %4 : vector<8x1xf32>
    %6 = math.rsqrt %5 : vector<8x1xf32>
    %7 = vector.broadcast %6 : vector<8x1xf32> to vector<8x32xf32>
    %8 = arith.mulf %0, %7 : vector<8x32xf32>
    %cst_2 = arith.constant dense<0.000000e+00> : vector<8x8xf32>
    %9 = tpu.matmul %8, %8, %cst_2 {dimension_numbers = #tpu.dot_dimension_numbers<[1], [1], [0], [0], [0, 0, 1, 0], [], []>} : vector<8x32xf32>, vector<8x32xf32>, vector<8x8xf32> -> vector<8x8xf32>
    %cst_3 = arith.constant 2.000000e+00 : f32
    %10 = vector.broadcast %cst_3 : f32 to vector<8x8xf32>
    %11 = arith.mulf %10, %9 : vector<8x8xf32>
    %cst_4 = arith.constant 2.000000e+00 : f32
    %12 = vector.broadcast %cst_4 : f32 to vector<8x8xf32>
    %13 = arith.subf %12, %11 : vector<8x8xf32>
    %cst_5 = arith.constant 0.000000e+00 : f32
    %14 = vector.broadcast %cst_5 : f32 to vector<8x8xf32>
    %15 = arith.maximumf %13, %14 : vector<8x8xf32>
    %16 = math.sqrt %15 : vector<8x8xf32>
    %17 = tpu.iota {dimensions = array<i32: 1>} : vector<8x64xi32>
    %18 = tpu.iota {dimensions = array<i32: 0>} : vector<8x64xi32>
    %c8_i32 = arith.constant 8 : i32
    %19 = vector.broadcast %c8_i32 : i32 to vector<8x64xi32>
    %20 = arith.muli %18, %19 : vector<8x64xi32>
    %21 = arith.subi %17, %20 : vector<8x64xi32>
    %c0_i32 = arith.constant 0 : i32
    %22 = vector.broadcast %c0_i32 : i32 to vector<8x64xi32>
    %23 = arith.cmpi sge, %21, %22 : vector<8x64xi32>
    %c8_i32_6 = arith.constant 8 : i32
    %24 = vector.broadcast %c8_i32_6 : i32 to vector<8x64xi32>
    %25 = arith.cmpi slt, %21, %24 : vector<8x64xi32>
    %26 = arith.andi %23, %25 : vector<8x64xi1>
    %cst_7 = arith.constant 1.000000e+00 : f32
    %cst_8 = arith.constant 0.000000e+00 : f32
    %27 = vector.broadcast %cst_7 : f32 to vector<8x64xf32>
    %28 = vector.broadcast %cst_8 : f32 to vector<8x64xf32>
    %29 = arith.select %26, %27, %28 : vector<8x64xi1>, vector<8x64xf32>
    %30 = arith.sitofp %21 : vector<8x64xi32> to vector<8x64xf32>
    %cst_9 = arith.constant 0.000000e+00 : f32
    %31 = vector.broadcast %cst_9 : f32 to vector<8x64xf32>
    %32 = arith.select %26, %30, %31 : vector<8x64xi1>, vector<8x64xf32>
    %cst_10 = arith.constant dense<0.000000e+00> : vector<64xf32>
    %33 = vector.multi_reduction <add>, %32, %cst_10 [0] : vector<8x64xf32> to vector<64xf32>
    %34 = vector.shape_cast %33 : vector<64xf32> to vector<1x64xf32>
    %35 = tpu.iota {dimensions = array<i32: 0>} : vector<8x1xi32>
    %36 = arith.sitofp %35 : vector<8x1xi32> to vector<8x1xf32>
    %37 = vector.broadcast %36 : vector<8x1xf32> to vector<8x64xf32>
    %38 = vector.broadcast %34 : vector<1x64xf32> to vector<8x64xf32>
    %39 = arith.cmpf oeq, %37, %38 : vector<8x64xf32>
    %cst_11 = arith.constant 1.000000e+00 : f32
    %cst_12 = arith.constant 0.000000e+00 : f32
    %40 = vector.broadcast %cst_11 : f32 to vector<8x64xf32>
    %41 = vector.broadcast %cst_12 : f32 to vector<8x64xf32>
    %42 = arith.select %39, %40, %41 : vector<8x64xi1>, vector<8x64xf32>
    %cst_13 = arith.constant dense<0.000000e+00> : vector<8x64xf32>
    %43 = tpu.matmul %16, %29, %cst_13 {dimension_numbers = #tpu.dot_dimension_numbers<[1], [0], [0], [1], [0, 0, 1, 1], [], []>} : vector<8x8xf32>, vector<8x64xf32>, vector<8x64xf32> -> vector<8x64xf32>
    %cst_14 = arith.constant dense<0.000000e+00> : vector<8x64xf32>
    %44 = tpu.matmul %16, %42, %cst_14 {dimension_numbers = #tpu.dot_dimension_numbers<[1], [0], [0], [1], [0, 0, 1, 1], [], []>} : vector<8x8xf32>, vector<8x64xf32>, vector<8x64xf32> -> vector<8x64xf32>
    %c0_15 = arith.constant 0 : index
    %c0_16 = arith.constant 0 : index
    %45 = vector.load %arg0[%c0_15, %c0_16] : memref<8x1xi32, #tpu.memory_space<vmem>>, vector<8x1xi32>
    %c0_17 = arith.constant 0 : index
    %c0_18 = arith.constant 0 : index
    %46 = vector.load %arg1[%c0_17, %c0_18] : memref<1x8xi32, #tpu.memory_space<vmem>>, vector<1x8xi32>
    %47 = vector.broadcast %45 : vector<8x1xi32> to vector<8x8xi32>
    %48 = vector.broadcast %46 : vector<1x8xi32> to vector<8x8xi32>
    %49 = arith.cmpi eq, %47, %48 : vector<8x8xi32>
    %50 = tpu.iota {dimensions = array<i32: 0>} : vector<8x8xi32>
    %51 = tpu.iota {dimensions = array<i32: 1>} : vector<8x8xi32>
    %52 = arith.cmpi ne, %50, %51 : vector<8x8xi32>
    %53 = arith.andi %49, %52 : vector<8x8xi1>
    %cst_19 = arith.constant 1.000000e+00 : f32
    %cst_20 = arith.constant 0.000000e+00 : f32
    %54 = vector.broadcast %cst_19 : f32 to vector<8x8xf32>
    %55 = vector.broadcast %cst_20 : f32 to vector<8x8xf32>
    %56 = arith.select %53, %54, %55 : vector<8x8xi1>, vector<8x8xf32>
    %cst_21 = arith.constant 0.000000e+00 : f32
    %cst_22 = arith.constant 1.000000e+00 : f32
    %57 = vector.broadcast %cst_21 : f32 to vector<8x8xf32>
    %58 = vector.broadcast %cst_22 : f32 to vector<8x8xf32>
    %59 = arith.select %49, %57, %58 : vector<8x8xi1>, vector<8x8xf32>
    %cst_23 = arith.constant dense<0.000000e+00> : vector<8x64xf32>
    %60 = tpu.matmul %56, %29, %cst_23 {dimension_numbers = #tpu.dot_dimension_numbers<[1], [0], [0], [1], [0, 0, 1, 1], [], []>} : vector<8x8xf32>, vector<8x64xf32>, vector<8x64xf32> -> vector<8x64xf32>
    %cst_24 = arith.constant dense<0.000000e+00> : vector<8x64xf32>
    %61 = tpu.matmul %59, %42, %cst_24 {dimension_numbers = #tpu.dot_dimension_numbers<[1], [0], [0], [1], [0, 0, 1, 1], [], []>} : vector<8x8xf32>, vector<8x64xf32>, vector<8x64xf32> -> vector<8x64xf32>
    %cst_25 = arith.constant 5.000000e-01 : f32
    %62 = vector.broadcast %cst_25 : f32 to vector<8x64xf32>
    %63 = arith.cmpf ogt, %60, %62 : vector<8x64xf32>
    %cst_26 = arith.constant 5.000000e-01 : f32
    %64 = vector.broadcast %cst_26 : f32 to vector<8x64xf32>
    %65 = arith.cmpf ogt, %61, %64 : vector<8x64xf32>
    %66 = arith.andi %63, %65 : vector<8x64xi1>
    %67 = arith.subf %43, %44 : vector<8x64xf32>
    %cst_27 = arith.constant 5.000000e-02 : f32
    %68 = vector.broadcast %cst_27 : f32 to vector<8x64xf32>
    %69 = arith.addf %67, %68 : vector<8x64xf32>
    %cst_28 = arith.constant 0.000000e+00 : f32
    %70 = vector.broadcast %cst_28 : f32 to vector<8x64xf32>
    %71 = arith.cmpf ogt, %69, %70 : vector<8x64xf32>
    %72 = arith.andi %66, %71 : vector<8x64xi1>
    %cst_29 = arith.constant 0.000000e+00 : f32
    %73 = vector.broadcast %cst_29 : f32 to vector<8x64xf32>
    %74 = arith.select %72, %69, %73 : vector<8x64xi1>, vector<8x64xf32>
    %75 = vector.shape_cast %74 : vector<8x64xf32> to vector<1x8x64xf32>
    %cst_30 = arith.constant dense<0.000000e+00> : vector<1xf32>
    %76 = vector.multi_reduction <add>, %75, %cst_30 [1, 2] : vector<1x8x64xf32> to vector<1xf32>
    %77 = vector.shape_cast %76 : vector<1xf32> to vector<1x1x1xf32>
    %78 = vector.extract %77[0, 0, 0] : f32 from vector<1x1x1xf32>
    %cst_31 = arith.constant 1.000000e+00 : f32
    %cst_32 = arith.constant 0.000000e+00 : f32
    %79 = vector.broadcast %cst_31 : f32 to vector<8x64xf32>
    %80 = vector.broadcast %cst_32 : f32 to vector<8x64xf32>
    %81 = arith.select %72, %79, %80 : vector<8x64xi1>, vector<8x64xf32>
    %82 = vector.shape_cast %81 : vector<8x64xf32> to vector<1x8x64xf32>
    %cst_33 = arith.constant dense<0.000000e+00> : vector<1xf32>
    %83 = vector.multi_reduction <add>, %82, %cst_33 [1, 2] : vector<1x8x64xf32> to vector<1xf32>
    %84 = vector.shape_cast %83 : vector<1xf32> to vector<1x1x1xf32>
    %85 = vector.extract %84[0, 0, 0] : f32 from vector<1x1x1xf32>
    %cst_34 = arith.constant -2.000000e-01 : f32
    %86 = vector.broadcast %cst_34 : f32 to vector<8x64xf32>
    %87 = arith.cmpf oge, %67, %86 : vector<8x64xf32>
    %88 = arith.andi %66, %87 : vector<8x64xi1>
    %cst_35 = arith.constant 1.000000e+00 : f32
    %cst_36 = arith.constant 0.000000e+00 : f32
    %89 = vector.broadcast %cst_35 : f32 to vector<8x64xf32>
    %90 = vector.broadcast %cst_36 : f32 to vector<8x64xf32>
    %91 = arith.select %88, %89, %90 : vector<8x64xi1>, vector<8x64xf32>
    %92 = vector.shape_cast %91 : vector<8x64xf32> to vector<1x8x64xf32>
    %cst_37 = arith.constant dense<0.000000e+00> : vector<1xf32>
    %93 = vector.multi_reduction <add>, %92, %cst_37 [1, 2] : vector<1x8x64xf32> to vector<1xf32>
    %94 = vector.shape_cast %93 : vector<1xf32> to vector<1x1x1xf32>
    %95 = vector.extract %94[0, 0, 0] : f32 from vector<1x1x1xf32>
    %cst_38 = arith.constant 0.000000e+00 : f32
    %96 = arith.cmpf ogt, %85, %cst_38 : f32
    %cst_39 = arith.constant 1.000000e+00 : f32
    %97 = arith.maximumf %85, %cst_39 : f32
    %98 = arith.divf %78, %97 : f32
    %cst_40 = arith.constant 0.000000e+00 : f32
    %99 = arith.select %96, %98, %cst_40 : f32
    %c0_41 = arith.constant 0 : index
    %c0_42 = arith.constant 0 : index
    %100 = vector.load %arg4[%c0_41, %c0_42] : memref<16x128xf32, #tpu.memory_space<vmem>>, vector<16x128xf32>
    %cst_43 = arith.constant 1.600000e+01 : f32
    %101 = vector.broadcast %cst_43 : f32 to vector<16x128xf32>
    %102 = arith.mulf %100, %101 : vector<16x128xf32>
    %cst_44 = arith.constant dense<0xFF800000> : vector<128xf32>
    %103 = vector.multi_reduction <maximumf>, %102, %cst_44 [0] : vector<16x128xf32> to vector<128xf32>
    %104 = vector.shape_cast %103 : vector<128xf32> to vector<1x128xf32>
    %105 = vector.broadcast %104 : vector<1x128xf32> to vector<16x128xf32>
    %106 = arith.subf %102, %105 : vector<16x128xf32>
    %107 = math.exp %106 : vector<16x128xf32>
    %cst_45 = arith.constant dense<0.000000e+00> : vector<128xf32>
    %108 = vector.multi_reduction <add>, %107, %cst_45 [0] : vector<16x128xf32> to vector<128xf32>
    %109 = vector.shape_cast %108 : vector<128xf32> to vector<1x128xf32>
    %110 = math.log %109 : vector<1x128xf32>
    %cst_46 = arith.constant dense<0.000000e+00> : vector<128xf32>
    %111 = vector.multi_reduction <add>, %102, %cst_46 [0] : vector<16x128xf32> to vector<128xf32>
    %112 = vector.shape_cast %111 : vector<128xf32> to vector<1x128xf32>
    %113 = tpu.iota {dimensions = array<i32: 0>} : vector<16x128xi32>
    %c0_47 = arith.constant 0 : index
    %c0_48 = arith.constant 0 : index
    %114 = vector.load %arg2[%c0_47, %c0_48] : memref<1x128xi32, #tpu.memory_space<vmem>>, vector<1x128xi32>
    %115 = vector.broadcast %114 : vector<1x128xi32> to vector<16x128xi32>
    %116 = arith.cmpi eq, %113, %115 : vector<16x128xi32>
    %cst_49 = arith.constant 0.000000e+00 : f32
    %117 = vector.broadcast %cst_49 : f32 to vector<16x128xf32>
    %118 = arith.select %116, %102, %117 : vector<16x128xi1>, vector<16x128xf32>
    %cst_50 = arith.constant dense<0.000000e+00> : vector<128xf32>
    %119 = vector.multi_reduction <add>, %118, %cst_50 [0] : vector<16x128xf32> to vector<128xf32>
    %120 = vector.shape_cast %119 : vector<128xf32> to vector<1x128xf32>
    %cst_51 = arith.constant 0.899999976 : f32
    %121 = vector.broadcast %cst_51 : f32 to vector<1x128xf32>
    %122 = arith.mulf %121, %120 : vector<1x128xf32>
    %cst_52 = arith.constant 6.250000e-03 : f32
    %123 = vector.broadcast %cst_52 : f32 to vector<1x128xf32>
    %124 = arith.mulf %123, %112 : vector<1x128xf32>
    %125 = arith.addf %122, %124 : vector<1x128xf32>
    %126 = arith.addf %104, %110 : vector<1x128xf32>
    %127 = arith.subf %125, %126 : vector<1x128xf32>
    %128 = vector.shape_cast %127 : vector<1x128xf32> to vector<1x1x128xf32>
    %cst_53 = arith.constant dense<0.000000e+00> : vector<1xf32>
    %129 = vector.multi_reduction <add>, %128, %cst_53 [1, 2] : vector<1x1x128xf32> to vector<1xf32>
    %130 = vector.shape_cast %129 : vector<1xf32> to vector<1x1x1xf32>
    %131 = vector.extract %130[0, 0, 0] : f32 from vector<1x1x1xf32>
    %cst_54 = arith.constant 0.000000e+00 : f32
    %132 = arith.subf %cst_54, %131 : f32
    %cst_55 = arith.constant 1.280000e+02 : f32
    %133 = arith.divf %132, %cst_55 : f32
    %cst_56 = arith.constant 1.000000e+00 : f32
    %134 = arith.mulf %cst_56, %99 : f32
    %cst_57 = arith.constant 1.000000e-01 : f32
    %135 = arith.mulf %cst_57, %133 : f32
    %136 = arith.addf %134, %135 : f32
    %c0_58 = arith.constant 0 : index
    %137 = memref.load %arg5[%c0_58] : memref<4xf32, #tpu.memory_space<smem>>
    memref.store %136, %arg5[%c0_58] : memref<4xf32, #tpu.memory_space<smem>>
    %c1 = arith.constant 1 : index
    %138 = memref.load %arg5[%c1] : memref<4xf32, #tpu.memory_space<smem>>
    memref.store %99, %arg5[%c1] : memref<4xf32, #tpu.memory_space<smem>>
    %c2 = arith.constant 2 : index
    %139 = memref.load %arg5[%c2] : memref<4xf32, #tpu.memory_space<smem>>
    memref.store %133, %arg5[%c2] : memref<4xf32, #tpu.memory_space<smem>>
    %c3 = arith.constant 3 : index
    %140 = memref.load %arg5[%c3] : memref<4xf32, #tpu.memory_space<smem>>
    memref.store %95, %arg5[%c3] : memref<4xf32, #tpu.memory_space<smem>>
    return
  }
}

</mosaic_0001>

<llo_original>
// kernel: loss_aggregator_forward.2
$region0: #{loss_aggregator_forward.2}
  #allocation0 [shape = 'u32[]', space=smem, size = 0x4, offset = 0x4, fixed_abs, tag = 'smem constant byte address 0x4 - core index']
  #allocation1 [shape = 'u32[144,128]{1,0:T(1,128)}', space=vmem, size = 0x12000, scoped, tag = 'internal scratch']
  %s0 = inlined_call_operand.vmem [shape: s32[8,1], index: 0, kind: input, shape index: {}]
  %s1 = inlined_call_operand.vmem [shape: s32[1,128], index: 1, kind: input, shape index: {}]
  %s2 = inlined_call_operand.vmem [shape: f32[8,32], index: 2, kind: input, shape index: {}]
  %s3 = inlined_call_operand.vmem [shape: f32[16,128], index: 3, kind: input, shape index: {}]
  %s4 = inlined_call_operand.vmem [shape: s32[8], index: 4, kind: input, shape index: {}]
  %s5 = inlined_call_operand.vmem [shape: f32[4], index: 5, kind: output, shape index: {}]
  %s6 = sld [smem:[#allocation0]]
  $region30: #{loss_aggregator_forward.2} parent=0
    _
  %s8 = ssub.s32 1, %s6
  %s9 = scalar_select 0, %s8, %s6
  $region1: #{loss_aggregator_forward.2} parent=0
    #allocation2 [shape = 'u8[512]{0}', space=smem, size = 0x200, scoped, tag = 'output window, operand 0, single buffered']
    #allocation3 [shape = 's32[1]{0}', space=sflag, size = 0x4, scoped, tag = 'scoped memory for loss_aggregator_forward.2']
    #allocation4 [shape = 'u8[512]{0}', space=vmem, size = 0x400, dematerialized = true, scoped, tag = 'FusionAdapter Buffer %fusion.1 = s32[1,8]{1,0:T(1,128)} fusion(%param_4.1), kind=kLoop, calls=%fused_computation.1.clone, metadata={op_name="jit(loss_aggregator_forward)/reshape" stack_frame_id=10}']
    %10 = vsyncpa [#allocation3], 0
    // Predicated region
    $region2: #{loss_aggregator_forward.2} parent=1 // pred_check
      _
    $region3: #{loss_aggregator_forward.2} parent=1 // pred_check_branch
      %12 = sbr.rel (0) target = $region5
    $region4: #{loss_aggregator_forward.2} parent=1 // pred_region
      _
    $region5: #{loss_aggregator_forward.2} parent=1 // pred_fallthru
      _
    // Predicated region
    $region6: #{loss_aggregator_forward.2} parent=1 // pred_check
      _
    $region7: #{loss_aggregator_forward.2} parent=1 // pred_check_branch
      %14 = sbr.rel (0) target = $region9
    $region8: #{loss_aggregator_forward.2} parent=1 // pred_region
      _
    $region9: #{loss_aggregator_forward.2} parent=1 // pred_fallthru
      _
    // Predicated region
    $region10: #{loss_aggregator_forward.2} parent=1 // pred_check
      _
    $region11: #{loss_aggregator_forward.2} parent=1 // pred_check_branch
      %16 = sbr.rel (0) target = $region13
    $region12: #{loss_aggregator_forward.2} parent=1 // pred_region
      _
    $region13: #{loss_aggregator_forward.2} parent=1 // pred_fallthru
      _
    // Predicated region
    $region14: #{loss_aggregator_forward.2} parent=1 // pred_check
      _
    $region15: #{loss_aggregator_forward.2} parent=1 // pred_check_branch
      %18 = sbr.rel (0) target = $region17
    $region16: #{loss_aggregator_forward.2} parent=1 // pred_region
      _
    $region17: #{loss_aggregator_forward.2} parent=1 // pred_fallthru
      _
    // Predicated region
    $region18: #{loss_aggregator_forward.2} parent=1 // pred_check
      _
    $region19: #{loss_aggregator_forward.2} parent=1 // pred_check_branch
      %20 = sbr.rel (0) target = $region21
    $region20: #{loss_aggregator_forward.2} parent=1 // pred_region
      _
    $region21: #{loss_aggregator_forward.2} parent=1 // pred_fallthru
      _
    %v21 = vld [vmem:[%s4] sm:$0x1]
    %23 = vst [vmem:[#allocation4] sm:$0x1] %v21
    %v24 = vld [vmem:[%s2] sm:$0xff]
    %v25 = vmul.f32 %v24, %v24
    %vm26 = vcmask 261120
    %v27 = vsel %vm26, %v25, 0.0
    %28 = vadd.xlane.f32.xlu0 %v27
    %v29 = vpop.xlane.xlu0 %28
    %v30 = vmax.f32 %v29, 1e-24
    %v31 = vrsqrt.pop %v30
    %v32 = vmul.f32 %v24, %v31
    %v34 = vsel %vm26, %v32, 0
    %36 = vmatprep.subr.mxu0 0.0
    %37 = vmatpush1.xpose.msra.mxu0 %v34
    %38 = vmatprep.subr.mxu0 0.0
    %39 = vmatpush1.xpose.msra.mxu0 0.0
    %40 = vmatprep.subr.mxu0 0.0
    %41 = vmatpush1.xpose.msra.mxu0 0.0
    %42 = vmatprep.subr.mxu0 0.0
    %43 = vmatpush1.xpose.msra.mxu0 0.0
    %44 = vmatprep.subr.mxu0 0.0
    %45 = vmatpush1.xpose.msra.mxu0 0.0
    %46 = vmatprep.subr.mxu0 0.0
    %47 = vmatpush1.xpose.msra.mxu0 0.0
    %48 = vmatprep.subr.mxu0 0.0
    %49 = vmatpush1.xpose.msra.mxu0 0.0
    %50 = vmatprep.subr.mxu0 0.0
    %51 = vmatpush1.xpose.msra.mxu0 0.0
    %52 = vmatprep.subr.mxu0 0.0
    %53 = vmatpush1.xpose.msra.mxu0 0.0
    %54 = vmatprep.subr.mxu0 0.0
    %55 = vmatpush1.xpose.msra.mxu0 0.0
    %56 = vmatprep.subr.mxu0 0.0
    %57 = vmatpush1.xpose.msra.mxu0 0.0
    %58 = vmatprep.subr.mxu0 0.0
    %59 = vmatpush1.xpose.msra.mxu0 0.0
    %60 = vmatprep.subr.mxu0 0.0
    %61 = vmatpush1.xpose.msra.mxu0 0.0
    %62 = vmatprep.subr.mxu0 0.0
    %63 = vmatpush1.xpose.msra.mxu0 0.0
    %64 = vmatprep.subr.mxu0 0.0
    %65 = vmatpush1.xpose.msra.mxu0 0.0
    %66 = vmatprep.subr.mxu0 0.0
    %67 = vmatpush1.xpose.msra.mxu0 0.0
    %68 = vmatprep.subr.mxu0 0.0
    %69 = vmatpush1.xpose.msra.mxu0 0.0
    %70 = vmatprep.subr.mxu0 0.0
    %71 = vmatpush1.xpose.msra.mxu0 0.0
    %72 = vmatprep.subr.mxu0 0.0
    %73 = vmatpush1.xpose.msra.mxu0 0.0
    %74 = vmatprep.subr.mxu0 0.0
    %75 = vmatpush1.xpose.msra.mxu0 0.0
    %76 = vmatprep.subr.mxu0 0.0
    %77 = vmatpush1.xpose.msra.mxu0 0.0
    %78 = vmatprep.subr.mxu0 0.0
    %79 = vmatpush1.xpose.msra.mxu0 0.0
    %80 = vmatprep.subr.mxu0 0.0
    %81 = vmatpush1.xpose.msra.mxu0 0.0
    %82 = vmatprep.subr.mxu0 0.0
    %83 = vmatpush1.xpose.msra.mxu0 0.0
    %84 = vmatprep.subr.mxu0 0.0
    %85 = vmatpush1.xpose.msra.mxu0 0.0
    %86 = vmatprep.subr.mxu0 0.0
    %87 = vmatpush1.xpose.msra.mxu0 0.0
    %88 = vmatprep.subr.mxu0 0.0
    %89 = vmatpush1.xpose.msra.mxu0 0.0
    %90 = vmatprep.subr.mxu0 0.0
    %91 = vmatpush1.xpose.msra.mxu0 0.0
    %92 = vmatprep.subr.mxu0 0.0
    %93 = vmatpush1.xpose.msra.mxu0 0.0
    %94 = vmatprep.subr.mxu0 0.0
    %95 = vmatpush1.xpose.msra.mxu0 0.0
    %96 = vmatprep.subr.mxu0 0.0
    %97 = vmatpush1.xpose.msra.mxu0 0.0
    %98 = vmatprep.subr.mxu0 0.0
    %99 = vmatpush1.xpose.msra.mxu0 0.0
    %100 = vmatprep.mubr.f32.mxu0 0.0
    %101 = vmatmul.mubr.f32.gmra.mrb[0].mxu0 %v34
    %v102 = vpop.f32.mrb[0].mxu0
    %v103 = vadd.f32 0.0, %v102
    %v104 = vpop.f32.mrb[0].mxu0
    %105 = vdwg.mxu0
    %v106 = vmul.f32 %v103, 2.0
    %v107 = vsub.f32 2.0, %v106
    %v108 = vmax.f32 %v107, 0.0
    %v109 = vrsqrt.pop %v108
    %v110 = vmul.f32 %v108, %v109
    %vm111 = vcmp.eq.f32.partialorder %v108, inf
    %v112 = vsel %vm111, %v108, %v110
    %vm113 = vcmp.eq.f32.partialorder %v108, 0.0
    %v114 = vand.u32 %v108, 2147483648
    %v115 = vsel %vm113, %v114, %v112
    %v116 = vlaneseq
    %v117 = vand.u32 %v116, 127
    %v118 = vlaneseq
    %v119 = vshrl.u32 %v118, 7
    %v120 = vmul.u32 %v119, 8
    %v121 = vsub.s32 %v117, %v120
    %vm122 = vcmp.ge.s32.totalorder %v121, 0
    %vm123 = vcmp.lt.s32.totalorder %v121, 8
    %vm124 = vmand %vm122, %vm123
    %v125 = vsel %vm124, 1.0, 0.0
    %v126 = vcvt.s32.f32 %v121
    %v127 = vsel %vm124, %v126, 0.0
    %vm128 = vcmask 523264
    %v129 = vsel %vm128, %v127, 0.0
    %v130 = vrot.slane %v129, 4
    %v131 = vadd.f32 %v129, %v130
    %v132 = vrot.slane %v131, 2
    %v133 = vadd.f32 %v131, %v132
    %v134 = vrot.slane %v133, 1
    %v135 = vadd.f32 %v133, %v134
    %v136 = vcvt.s32.f32 %v119
    %vm137 = vcmp.eq.f32.partialorder %v136, %v135
    %v138 = vsel %vm137, 1.0, 0.0
    %vm139 = vcmask 64512
    %v141 = vsel %vm139, %v115, 0
    %143 = vmatprep.subr.mxu0 0.0
    %144 = vmatpush1.msra.mxu0 %v125
    %145 = vmatprep.subr.mxu0 0.0
    %146 = vmatpush1.msra.mxu0 0.0
    %147 = vmatprep.subr.mxu0 0.0
    %148 = vmatpush1.msra.mxu0 0.0
    %149 = vmatprep.subr.mxu0 0.0
    %150 = vmatpush1.msra.mxu0 0.0
    %151 = vmatprep.subr.mxu0 0.0
    %152 = vmatpush1.msra.mxu0 0.0
    %153 = vmatprep.subr.mxu0 0.0
    %154 = vmatpush1.msra.mxu0 0.0
    %155 = vmatprep.subr.mxu0 0.0
    %156 = vmatpush1.msra.mxu0 0.0
    %157 = vmatprep.subr.mxu0 0.0
    %158 = vmatpush1.msra.mxu0 0.0
    %159 = vmatprep.subr.mxu0 0.0
    %160 = vmatpush1.msra.mxu0 0.0
    %161 = vmatprep.subr.mxu0 0.0
    %162 = vmatpush1.msra.mxu0 0.0
    %163 = vmatprep.subr.mxu0 0.0
    %164 = vmatpush1.msra.mxu0 0.0
    %165 = vmatprep.subr.mxu0 0.0
    %166 = vmatpush1.msra.mxu0 0.0
    %167 = vmatprep.subr.mxu0 0.0
    %168 = vmatpush1.msra.mxu0 0.0
    %169 = vmatprep.subr.mxu0 0.0
    %170 = vmatpush1.msra.mxu0 0.0
    %171 = vmatprep.subr.mxu0 0.0
    %172 = vmatpush1.msra.mxu0 0.0
    %173 = vmatprep.subr.mxu0 0.0
    %174 = vmatpush1.msra.mxu0 0.0
    %175 = vmatprep.subr.mxu0 0.0
    %176 = vmatpush1.msra.mxu0 0.0
    %177 = vmatprep.subr.mxu0 0.0
    %178 = vmatpush1.msra.mxu0 0.0
    %179 = vmatprep.subr.mxu0 0.0
    %180 = vmatpush1.msra.mxu0 0.0
    %181 = vmatprep.subr.mxu0 0.0
    %182 = vmatpush1.msra.mxu0 0.0
    %183 = vmatprep.subr.mxu0 0.0
    %184 = vmatpush1.msra.mxu0 0.0
    %185 = vmatprep.subr.mxu0 0.0
    %186 = vmatpush1.msra.mxu0 0.0
    %187 = vmatprep.subr.mxu0 0.0
    %188 = vmatpush1.msra.mxu0 0.0
    %189 = vmatprep.subr.mxu0 0.0
    %190 = vmatpush1.msra.mxu0 0.0
    %191 = vmatprep.subr.mxu0 0.0
    %192 = vmatpush1.msra.mxu0 0.0
    %193 = vmatprep.subr.mxu0 0.0
    %194 = vmatpush1.msra.mxu0 0.0
    %195 = vmatprep.subr.mxu0 0.0
    %196 = vmatpush1.msra.mxu0 0.0
    %197 = vmatprep.subr.mxu0 0.0
    %198 = vmatpush1.msra.mxu0 0.0
    %199 = vmatprep.subr.mxu0 0.0
    %200 = vmatpush1.msra.mxu0 0.0
    %201 = vmatprep.subr.mxu0 0.0
    %202 = vmatpush1.msra.mxu0 0.0
    %203 = vmatprep.subr.mxu0 0.0
    %204 = vmatpush1.msra.mxu0 0.0
    %205 = vmatprep.subr.mxu0 0.0
    %206 = vmatpush1.msra.mxu0 0.0
    %207 = vmatprep.mubr.f32.mxu0 0.0
    %208 = vmatmul.mubr.f32.gmra.mrb[0].mxu0 %v141
    %v209 = vpop.f32.mrb[0].mxu0
    %v210 = vadd.f32 0.0, %v209
    %v211 = vpop.f32.mrb[0].mxu0
    %212 = vdwg.mxu0
    %213 = vmatprep.subr.mxu0 0.0
    %214 = vmatpush1.msra.mxu0 %v138
    %215 = vmatprep.subr.mxu0 0.0
    %216 = vmatpush1.msra.mxu0 0.0
    %217 = vmatprep.subr.mxu0 0.0
    %218 = vmatpush1.msra.mxu0 0.0
    %219 = vmatprep.subr.mxu0 0.0
    %220 = vmatpush1.msra.mxu0 0.0
    %221 = vmatprep.subr.mxu0 0.0
    %222 = vmatpush1.msra.mxu0 0.0
    %223 = vmatprep.subr.mxu0 0.0
    %224 = vmatpush1.msra.mxu0 0.0
    %225 = vmatprep.subr.mxu0 0.0
    %226 = vmatpush1.msra.mxu0 0.0
    %227 = vmatprep.subr.mxu0 0.0
    %228 = vmatpush1.msra.mxu0 0.0
    %229 = vmatprep.subr.mxu0 0.0
    %230 = vmatpush1.msra.mxu0 0.0
    %231 = vmatprep.subr.mxu0 0.0
    %232 = vmatpush1.msra.mxu0 0.0
    %233 = vmatprep.subr.mxu0 0.0
    %234 = vmatpush1.msra.mxu0 0.0
    %235 = vmatprep.subr.mxu0 0.0
    %236 = vmatpush1.msra.mxu0 0.0
    %237 = vmatprep.subr.mxu0 0.0
    %238 = vmatpush1.msra.mxu0 0.0
    %239 = vmatprep.subr.mxu0 0.0
    %240 = vmatpush1.msra.mxu0 0.0
    %241 = vmatprep.subr.mxu0 0.0
    %242 = vmatpush1.msra.mxu0 0.0
    %243 = vmatprep.subr.mxu0 0.0
    %244 = vmatpush1.msra.mxu0 0.0
    %245 = vmatprep.subr.mxu0 0.0
    %246 = vmatpush1.msra.mxu0 0.0
    %247 = vmatprep.subr.mxu0 0.0
    %248 = vmatpush1.msra.mxu0 0.0
    %249 = vmatprep.subr.mxu0 0.0
    %250 = vmatpush1.msra.mxu0 0.0
    %251 = vmatprep.subr.mxu0 0.0
    %252 = vmatpush1.msra.mxu0 0.0
    %253 = vmatprep.subr.mxu0 0.0
    %254 = vmatpush1.msra.mxu0 0.0
    %255 = vmatprep.subr.mxu0 0.0
    %256 = vmatpush1.msra.mxu0 0.0
    %257 = vmatprep.subr.mxu0 0.0
    %258 = vmatpush1.msra.mxu0 0.0
    %259 = vmatprep.subr.mxu0 0.0
    %260 = vmatpush1.msra.mxu0 0.0
    %261 = vmatprep.subr.mxu0 0.0
    %262 = vmatpush1.msra.mxu0 0.0
    %263 = vmatprep.subr.mxu0 0.0
    %264 = vmatpush1.msra.mxu0 0.0
    %265 = vmatprep.subr.mxu0 0.0
    %266 = vmatpush1.msra.mxu0 0.0
    %267 = vmatprep.subr.mxu0 0.0
    %268 = vmatpush1.msra.mxu0 0.0
    %269 = vmatprep.subr.mxu0 0.0
    %270 = vmatpush1.msra.mxu0 0.0
    %271 = vmatprep.subr.mxu0 0.0
    %272 = vmatpush1.msra.mxu0 0.0
    %273 = vmatprep.subr.mxu0 0.0
    %274 = vmatpush1.msra.mxu0 0.0
    %275 = vmatprep.subr.mxu0 0.0
    %276 = vmatpush1.msra.mxu0 0.0
    %277 = vmatprep.mubr.f32.mxu0 0.0
    %278 = vmatmul.mubr.f32.gmra.mrb[0].mxu0 %v141
    %v279 = vpop.f32.mrb[0].mxu0
    %v280 = vadd.f32 0.0, %v279
    %v281 = vpop.f32.mrb[0].mxu0
    %282 = vdwg.mxu0
    %v283 = vld [vmem:[%s0] sm:$0xff]
    %v284 = vld [vmem:[#allocation4] sm:$0x1]
    %285 = vset.pattern.permute.xlu0 0
    %286 = vperm.xlu0 %285, %v283
    %v287 = vpop.permute.xlu0 %286
    %v288 = vlaneseq
    %v289 = vshrl.u32 %v288, 7
    %v290 = vsub.s32 0, %v289
    %v291 = vrot.slane %v284, %v290
    %vm292 = vcmp.eq.s32.totalorder %v287, %v291
    %vm293 = vcmp.ne.s32.totalorder %v119, %v117
    %vm294 = vmand %vm292, %vm293
    %v295 = vsel %vm294, 1.0, 0.0
    %v296 = vsel %vm292, 0.0, 1.0
    %v298 = vsel %vm139, %v295, 0
    %300 = vmatprep.subr.mxu0 0.0
    %301 = vmatpush1.msra.mxu0 %v125
    %302 = vmatprep.subr.mxu0 0.0
    %303 = vmatpush1.msra.mxu0 0.0
    %304 = vmatprep.subr.mxu0 0.0
    %305 = vmatpush1.msra.mxu0 0.0
    %306 = vmatprep.subr.mxu0 0.0
    %307 = vmatpush1.msra.mxu0 0.0
    %308 = vmatprep.subr.mxu0 0.0
    %309 = vmatpush1.msra.mxu0 0.0
    %310 = vmatprep.subr.mxu0 0.0
    %311 = vmatpush1.msra.mxu0 0.0
    %312 = vmatprep.subr.mxu0 0.0
    %313 = vmatpush1.msra.mxu0 0.0
    %314 = vmatprep.subr.mxu0 0.0
    %315 = vmatpush1.msra.mxu0 0.0
    %316 = vmatprep.subr.mxu0 0.0
    %317 = vmatpush1.msra.mxu0 0.0
    %318 = vmatprep.subr.mxu0 0.0
    %319 = vmatpush1.msra.mxu0 0.0
    %320 = vmatprep.subr.mxu0 0.0
    %321 = vmatpush1.msra.mxu0 0.0
    %322 = vmatprep.subr.mxu0 0.0
    %323 = vmatpush1.msra.mxu0 0.0
    %324 = vmatprep.subr.mxu0 0.0
    %325 = vmatpush1.msra.mxu0 0.0
    %326 = vmatprep.subr.mxu0 0.0
    %327 = vmatpush1.msra.mxu0 0.0
    %328 = vmatprep.subr.mxu0 0.0
    %329 = vmatpush1.msra.mxu0 0.0
    %330 = vmatprep.subr.mxu0 0.0
    %331 = vmatpush1.msra.mxu0 0.0
    %332 = vmatprep.subr.mxu0 0.0
    %333 = vmatpush1.msra.mxu0 0.0
    %334 = vmatprep.subr.mxu0 0.0
    %335 = vmatpush1.msra.mxu0 0.0
    %336 = vmatprep.subr.mxu0 0.0
    %337 = vmatpush1.msra.mxu0 0.0
    %338 = vmatprep.subr.mxu0 0.0
    %339 = vmatpush1.msra.mxu0 0.0
    %340 = vmatprep.subr.mxu0 0.0
    %341 = vmatpush1.msra.mxu0 0.0
    %342 = vmatprep.subr.mxu0 0.0
    %343 = vmatpush1.msra.mxu0 0.0
    %344 = vmatprep.subr.mxu0 0.0
    %345 = vmatpush1.msra.mxu0 0.0
    %346 = vmatprep.subr.mxu0 0.0
    %347 = vmatpush1.msra.mxu0 0.0
    %348 = vmatprep.subr.mxu0 0.0
    %349 = vmatpush1.msra.mxu0 0.0
    %350 = vmatprep.subr.mxu0 0.0
    %351 = vmatpush1.msra.mxu0 0.0
    %352 = vmatprep.subr.mxu0 0.0
    %353 = vmatpush1.msra.mxu0 0.0
    %354 = vmatprep.subr.mxu0 0.0
    %355 = vmatpush1.msra.mxu0 0.0
    %356 = vmatprep.subr.mxu0 0.0
    %357 = vmatpush1.msra.mxu0 0.0
    %358 = vmatprep.subr.mxu0 0.0
    %359 = vmatpush1.msra.mxu0 0.0
    %360 = vmatprep.subr.mxu0 0.0
    %361 = vmatpush1.msra.mxu0 0.0
    %362 = vmatprep.subr.mxu0 0.0
    %363 = vmatpush1.msra.mxu0 0.0
    %364 = vmatprep.mubr.f32.mxu0 0.0
    %365 = vmatmul.mubr.f32.gmra.mrb[0].mxu0 %v298
    %v366 = vpop.f32.mrb[0].mxu0
    %v367 = vadd.f32 0.0, %v366
    %v368 = vpop.f32.mrb[0].mxu0
    %369 = vdwg.mxu0
    %v371 = vsel %vm139, %v296, 0
    %373 = vmatprep.subr.mxu0 0.0
    %374 = vmatpush1.msra.mxu0 %v138
    %375 = vmatprep.subr.mxu0 0.0
    %376 = vmatpush1.msra.mxu0 0.0
    %377 = vmatprep.subr.mxu0 0.0
    %378 = vmatpush1.msra.mxu0 0.0
    %379 = vmatprep.subr.mxu0 0.0
    %380 = vmatpush1.msra.mxu0 0.0
    %381 = vmatprep.subr.mxu0 0.0
    %382 = vmatpush1.msra.mxu0 0.0
    %383 = vmatprep.subr.mxu0 0.0
    %384 = vmatpush1.msra.mxu0 0.0
    %385 = vmatprep.subr.mxu0 0.0
    %386 = vmatpush1.msra.mxu0 0.0
    %387 = vmatprep.subr.mxu0 0.0
    %388 = vmatpush1.msra.mxu0 0.0
    %389 = vmatprep.subr.mxu0 0.0
    %390 = vmatpush1.msra.mxu0 0.0
    %391 = vmatprep.subr.mxu0 0.0
    %392 = vmatpush1.msra.mxu0 0.0
    %393 = vmatprep.subr.mxu0 0.0
    %394 = vmatpush1.msra.mxu0 0.0
    %395 = vmatprep.subr.mxu0 0.0
    %396 = vmatpush1.msra.mxu0 0.0
    %397 = vmatprep.subr.mxu0 0.0
    %398 = vmatpush1.msra.mxu0 0.0
    %399 = vmatprep.subr.mxu0 0.0
    %400 = vmatpush1.msra.mxu0 0.0
    %401 = vmatprep.subr.mxu0 0.0
    %402 = vmatpush1.msra.mxu0 0.0
    %403 = vmatprep.subr.mxu0 0.0
    %404 = vmatpush1.msra.mxu0 0.0
    %405 = vmatprep.subr.mxu0 0.0
    %406 = vmatpush1.msra.mxu0 0.0
    %407 = vmatprep.subr.mxu0 0.0
    %408 = vmatpush1.msra.mxu0 0.0
    %409 = vmatprep.subr.mxu0 0.0
    %410 = vmatpush1.msra.mxu0 0.0
    %411 = vmatprep.subr.mxu0 0.0
    %412 = vmatpush1.msra.mxu0 0.0
    %413 = vmatprep.subr.mxu0 0.0
    %414 = vmatpush1.msra.mxu0 0.0
    %415 = vmatprep.subr.mxu0 0.0
    %416 = vmatpush1.msra.mxu0 0.0
    %417 = vmatprep.subr.mxu0 0.0
    %418 = vmatpush1.msra.mxu0 0.0
    %419 = vmatprep.subr.mxu0 0.0
    %420 = vmatpush1.msra.mxu0 0.0
    %421 = vmatprep.subr.mxu0 0.0
    %422 = vmatpush1.msra.mxu0 0.0
    %423 = vmatprep.subr.mxu0 0.0
    %424 = vmatpush1.msra.mxu0 0.0
    %425 = vmatprep.subr.mxu0 0.0
    %426 = vmatpush1.msra.mxu0 0.0
    %427 = vmatprep.subr.mxu0 0.0
    %428 = vmatpush1.msra.mxu0 0.0
    %429 = vmatprep.subr.mxu0 0.0
    %430 = vmatpush1.msra.mxu0 0.0
    %431 = vmatprep.subr.mxu0 0.0
    %432 = vmatpush1.msra.mxu0 0.0
    %433 = vmatprep.subr.mxu0 0.0
    %434 = vmatpush1.msra.mxu0 0.0
    %435 = vmatprep.subr.mxu0 0.0
    %436 = vmatpush1.msra.mxu0 0.0
    %437 = vmatprep.mubr.f32.mxu0 0.0
    %438 = vmatmul.mubr.f32.gmra.mrb[0].mxu0 %v371
    %v439 = vpop.f32.mrb[0].mxu0
    %v440 = vadd.f32 0.0, %v439
    %v441 = vpop.f32.mrb[0].mxu0
    %442 = vdwg.mxu0
    %vm443 = vcmp.gt.f32.partialorder %v367, 0.5
    %vm444 = vcmp.gt.f32.partialorder %v440, 0.5
    %vm445 = vmand %vm443, %vm444
    %v446 = vsub.f32 %v210, %v280
    %v447 = vadd.f32 %v446, 0.05
    %vm448 = vcmp.gt.f32.partialorder %v447, 0.0
    %vm449 = vmand %vm445, %vm448
    %v450 = vsel %vm449, %v447, 0.0
    %v451 = vsel %vm128, %v450, 0.0
    %452 = vadd.xlane.f32.xlu0 %v451
    %v453 = vpop.xlane.xlu0 %452
    %v454 = vrot.slane %v453, 4
    %v455 = vadd.f32 %v453, %v454
    %v456 = vrot.slane %v455, 2
    %v457 = vadd.f32 %v455, %v456
    %v458 = vrot.slane %v457, 1
    %v459 = vadd.f32 %v457, %v458
    %s460 = vtos %v459
    %v461 = vsel %vm449, 1.0, 0.0
    %v462 = vsel %vm128, %v461, 0.0
    %463 = vadd.xlane.f32.xlu0 %v462
    %v464 = vpop.xlane.xlu0 %463
    %v465 = vrot.slane %v464, 4
    %v466 = vadd.f32 %v464, %v465
    %v467 = vrot.slane %v466, 2
    %v468 = vadd.f32 %v466, %v467
    %v469 = vrot.slane %v468, 1
    %v470 = vadd.f32 %v468, %v469
    %s471 = vtos %v470
    %vm472 = vcmp.ge.f32.partialorder %v446, -0.2
    %vm473 = vmand %vm445, %vm472
    %v474 = vsel %vm473, 1.0, 0.0
    %v475 = vsel %vm128, %v474, 0.0
    %476 = vadd.xlane.f32.xlu0 %v475
    %v477 = vpop.xlane.xlu0 %476
    %v478 = vrot.slane %v477, 4
    %v479 = vadd.f32 %v477, %v478
    %v480 = vrot.slane %v479, 2
    %v481 = vadd.f32 %v479, %v480
    %v482 = vrot.slane %v481, 1
    %v483 = vadd.f32 %v481, %v482
    %s484 = vtos %v483
    %p485 = scmp.gt.f32.partialorder %s471, 0.0
    %s486 = smax.f32 %s471, 1.0
    %v487 = vstv %s486
    %v488 = vrcp.pop %v487
    %s489 = vtos %v488
    %s490 = smul.f32 %s460, %s489
    %s491 = scalar_select %p485, %s490, 0.0
    %v492 = vld [vmem:[%s3] sm:$0xff]
    %v493 = vld [vmem:[%s3 + $0x8] sm:$0xff]
    %v494 = vmul.f32 %v492, 16.0
    %v495 = vmul.f32 %v493, 16.0
    %v496 = vmax.f32 %v494, %v495
    %v497 = vrot.slane %v496, 4
    %v498 = vmax.f32 %v496, %v497
    %v499 = vrot.slane %v498, 2
    %v500 = vmax.f32 %v498, %v499
    %v501 = vrot.slane %v500, 1
    %v502 = vmax.f32 %v500, %v501
    %v503 = vsub.f32 %v494, %v502
    %v504 = vsub.f32 %v495, %v502
    %v505 = vmul.f32 %v503, 1.442695
    %v506 = vpow.pop %v505
    %v507 = vmul.f32 %v504, 1.442695
    %v508 = vpow.pop %v507
    %v509 = vadd.f32 %v506, %v508
    %v510 = vrot.slane %v509, 4
    %v511 = vadd.f32 %v509, %v510
    %v512 = vrot.slane %v511, 2
    %v513 = vadd.f32 %v511, %v512
    %v514 = vrot.slane %v513, 1
    %v515 = vadd.f32 %v513, %v514
    %v516 = vlog2.pop %v515
    %v517 = vmul.f32 %v516, 0.6931472
    %v518 = vadd.f32 %v494, %v495
    %v519 = vrot.slane %v518, 4
    %v520 = vadd.f32 %v518, %v519
    %v521 = vrot.slane %v520, 2
    %v522 = vadd.f32 %v520, %v521
    %v523 = vrot.slane %v522, 1
    %v524 = vadd.f32 %v522, %v523
    %v525 = vadd.s32 %v119, 8
    %v526 = vld [vmem:[%s1] sm:$0x1]
    %v527 = vlaneseq
    %v528 = vshrl.u32 %v527, 7
    %v529 = vsub.s32 0, %v528
    %v530 = vrot.slane %v526, %v529
    %vm531 = vcmp.eq.s32.totalorder %v119, %v530
    %vm532 = vcmp.eq.s32.totalorder %v525, %v530
    %v533 = vsel %vm531, %v494, 0.0
    %v534 = vsel %vm532, %v495, 0.0
    %v535 = vadd.f32 %v533, %v534
    %v536 = vrot.slane %v535, 4
    %v537 = vadd.f32 %v535, %v536
    %v538 = vrot.slane %v537, 2
    %v539 = vadd.f32 %v537, %v538
    %v540 = vrot.slane %v539, 1
    %v541 = vadd.f32 %v539, %v540
    %v542 = vmul.f32 %v541, 0.9
    %v543 = vmul.f32 %v524, 0.00625
    %v544 = vadd.f32 %v542, %v543
    %v545 = vadd.f32 %v502, %v517
    %v546 = vsub.f32 %v544, %v545
    %vm547 = vcmask 1040384
    %v548 = vsel %vm547, %v546, 0.0
    %549 = vadd.xlane.f32.xlu0 %v548
    %v550 = vpop.xlane.xlu0 %549
    %v551 = vrot.slane %v550, 4
    %v552 = vadd.f32 %v550, %v551
    %v553 = vrot.slane %v552, 2
    %v554 = vadd.f32 %v552, %v553
    %v555 = vrot.slane %v554, 1
    %v556 = vadd.f32 %v554, %v555
    %s557 = vtos %v556
    %s558 = ssub.f32 0.0, %s557
    %v559 = vrcp.pop 128.0
    %s560 = vtos %v559
    %s561 = smul.f32 %s558, %s560
    %s562 = smul.f32 %s561, 0.1
    %s563 = sadd.f32 %s491, %s562
    %s564 = scalar_lea.smem [#allocation2], 0
    %565 = sst [smem:[%s564]] %s563
    %s566 = scalar_lea.smem [#allocation2], 1
    %567 = sst [smem:[%s566]] %s491
    %s568 = scalar_lea.smem [#allocation2], 2
    %569 = sst [smem:[%s568]] %s561
    %s570 = scalar_lea.smem [#allocation2], 3
    %571 = sst [smem:[%s570]] %s484
    // Predicated region
    $region22: #{loss_aggregator_forward.2} parent=1 // pred_check
      _
    $region23: #{loss_aggregator_forward.2} parent=1 // pred_check_branch
      %573 = sbr.rel (0) target = $region25
    $region24: #{loss_aggregator_forward.2} parent=1 // pred_region
      %s575 = ssub.s32 16, 16
      %576 = vsyncadd [#allocation3], %s575
      %s578 = sshll.u32 %s5, 4
      %s579 = int_to_ptr.vmem [resolvable:$true] %s578
      %581 = dma.smem_to_vmem [#allocation2], 16, %s579, [#allocation3]
    $region25: #{loss_aggregator_forward.2} parent=1 // pred_fallthru
      _
    // Predicated region
    $region26: #{loss_aggregator_forward.2} parent=1 // pred_check
      _
    $region27: #{loss_aggregator_forward.2} parent=1 // pred_check_branch
      %583 = sbr.rel (0) target = $region29
    $region28: #{loss_aggregator_forward.2} parent=1 // pred_region
      %584 = dma.done [#allocation3], 16
    $region29: #{loss_aggregator_forward.2} parent=1 // pred_fallthru
      _
    %585 = sfence
    %586 = vsyncpa [#allocation3], 1

</llo_original>
